<compile_context>
chip_gen: v7x
topology: tpu7x:2x2x1
jax: 0.10.0
libtpu: 0.0.40
codegen_flags: <defaults>
</compile_context>

<pallas_src>
import functools

import jax
import jax.numpy as jnp
from jax import lax
from jax.experimental import pallas as pl
from jax.experimental.pallas import tpu as pltpu

EPS = 1e-5          # config.layer_norm_epsilon
M_RESIDUAL = 0.9    # config.m_residual
_GELU_C = 0.7978845608028654  # sqrt(2/pi), gelu_pytorch_tanh


# ------------------------------ tiling helpers ------------------------------ #

def _pick_tile(dim, preferred):
    for t in preferred:
        if dim % t == 0:
            return t
    return dim


def _row_tile(T):
    # Token-axis tile; capped at 256 for the v7x 64 MiB VMEM budget.
    return _pick_tile(T, (256, 128, 64, 32, 16, 8))


def _col_tile(N):
    # Output-feature (lane) tile: multiple of 128, else the full extent.
    return _pick_tile(N, (512, 256, 128))


def _inter_tile(I):
    # MLP intermediate-axis reduction tile.
    return _pick_tile(I, (512, 256, 128))


def _seq_tile(S):
    # q / kv sequence tile for flash attention (block_q == block_k).
    return _pick_tile(S, (256, 128, 64, 32, 16, 8))


def _vmem_limit(nbytes):
    """Explicit scoped-VMEM request: tiles + scratch + headroom, 32..64 MiB."""
    MiB = 1 << 20
    return int(min(max(nbytes + 4 * MiB, 32 * MiB), 64 * MiB))


# --------------------------------- kernel 1 ---------------------------------- #

def _rmsnorm_qkv_kernel(x_ref, g_ref, w_ref, o_ref, xn_ref, *, eps):
    """o[:, jTN:(j+1)TN] = (RMSNorm(x) * g) @ W[:, jTN:(j+1)TN] for one token tile."""
    @pl.when(pl.program_id(1) == 0)
    def _():
        x = x_ref[...].astype(jnp.float32)
        var = jnp.mean(x * x, axis=-1, keepdims=True)
        xn = x * lax.rsqrt(var + eps) * g_ref[...].astype(jnp.float32)
        # MXU-ready dtype (bf16 in production); f32 accumulation below.
        xn_ref[...] = xn.astype(xn_ref.dtype)

    o_ref[...] = jnp.dot(
        xn_ref[...], w_ref[...], preferred_element_type=jnp.float32
    ).astype(o_ref.dtype)


def rmsnorm_qkv(x, g, w):
    T, H = x.shape
    O = w.shape[1]
    TM = _row_tile(T)
    TN = _col_tile(O)
    itemsize = jnp.dtype(x.dtype).itemsize
    blk = (TM * H + H + H * TN + TM * TN) * itemsize
    scratch = TM * H * itemsize
    return pl.pallas_call(
        functools.partial(_rmsnorm_qkv_kernel, eps=EPS),
        out_shape=jax.ShapeDtypeStruct((T, O), x.dtype),
        grid=(T // TM, O // TN),
        in_specs=[pl.BlockSpec((TM, H), lambda i, j: (i, 0)),
                  pl.BlockSpec((1, H), lambda i, j: (0, 0)),
                  pl.BlockSpec((H, TN), lambda i, j: (0, j))],
        out_specs=pl.BlockSpec((TM, TN), lambda i, j: (i, j)),
        scratch_shapes=[pltpu.VMEM((TM, H), x.dtype)],
        compiler_params=pltpu.CompilerParams(
            dimension_semantics=("parallel", "arbitrary"),
            vmem_limit_bytes=_vmem_limit(2 * blk + scratch)),
    )(x, g, w)


# --------------------------------- kernel 2 ---------------------------------- #

def _flash_attn_kernel(q_ref, k_ref, v_ref, o_ref, m_ref, l_ref, acc_ref,
                       *, scale, block_q, block_k):
    """Online-softmax causal attention for one (batch*head, q-tile, kv-tile)."""
    qi = pl.program_id(1)
    ki = pl.program_id(2)

    @pl.when(ki == 0)
    def _():
        m_ref[...] = jnp.full_like(m_ref, -jnp.inf)
        l_ref[...] = jnp.zeros_like(l_ref)
        acc_ref[...] = jnp.zeros_like(acc_ref)

    # Skip kv tiles entirely in the causal future (valid because block_q == block_k).
    @pl.when(ki <= qi)
    def _():
        # Pre-scale q (S*D elements) instead of the (S,S) score matrix.
        q = (q_ref[0].astype(jnp.float32) * scale).astype(q_ref.dtype)
        # Contract last dims directly on the MXU — no k.T relayout.
        s = lax.dot_general(q, k_ref[0], (((1,), (1,)), ((), ())),
                            preferred_element_type=jnp.float32)
        row = qi * block_q + lax.broadcasted_iota(jnp.int32, s.shape, 0)
        col = ki * block_k + lax.broadcasted_iota(jnp.int32, s.shape, 1)
        # Safe: with block_q == block_k, every processed q row keeps at least
        # its diagonal entry unmasked, so no row is ever fully -inf.
        s = jnp.where(col <= row, s, -jnp.inf)

        m_prev = m_ref[...]
        m_new = jnp.maximum(m_prev, jnp.max(s, axis=-1, keepdims=True))
        a = jnp.exp(m_prev - m_new)
        p = jnp.exp(s - m_new)
        l_ref[...] = a * l_ref[...] + jnp.sum(p, axis=-1, keepdims=True)
        acc_ref[...] = a * acc_ref[...] + jnp.dot(
            p.astype(v_ref.dtype), v_ref[0], preferred_element_type=jnp.float32)
        m_ref[...] = m_new

    @pl.when(ki == pl.num_programs(2) - 1)
    def _():
        o_ref[0] = (acc_ref[...] * pl.reciprocal(l_ref[...], approx=False)
                    ).astype(o_ref.dtype)


def flash_causal_attention(q, k, v):
    BH, S, D = q.shape
    TQ = _seq_tile(S)
    TK = TQ
    scale = 1.0 / (D ** 0.5)
    itemsize = jnp.dtype(q.dtype).itemsize
    blk = (TQ * D + 2 * TK * D + TQ * D) * itemsize
    scratch = (2 * TQ + TQ * D) * 4
    return pl.pallas_call(
        functools.partial(_flash_attn_kernel, scale=scale,
                          block_q=TQ, block_k=TK),
        out_shape=jax.ShapeDtypeStruct((BH, S, D), q.dtype),
        grid=(BH, S // TQ, S // TK),
        in_specs=[pl.BlockSpec((1, TQ, D), lambda bh, qi, ki: (bh, qi, 0)),
                  pl.BlockSpec((1, TK, D), lambda bh, qi, ki: (bh, ki, 0)),
                  pl.BlockSpec((1, TK, D), lambda bh, qi, ki: (bh, ki, 0))],
        out_specs=pl.BlockSpec((1, TQ, D), lambda bh, qi, ki: (bh, qi, 0)),
        scratch_shapes=[pltpu.VMEM((TQ, 1), jnp.float32),   # running max
                        pltpu.VMEM((TQ, 1), jnp.float32),   # running denom
                        pltpu.VMEM((TQ, D), jnp.float32)],  # output accumulator
        compiler_params=pltpu.CompilerParams(
            dimension_semantics=("parallel", "parallel", "arbitrary"),
            vmem_limit_bytes=_vmem_limit(2 * blk + scratch)),
    )(q, k, v)


# --------------------------------- kernel 3 ---------------------------------- #

def _attnproj_kernel(a_ref, r_ref, w_ref, o_ref, *, m_residual):
    """hs = (attn @ W_attn_proj) * m_residual + residual, N-tiled."""
    h = jnp.dot(a_ref[...], w_ref[...], preferred_element_type=jnp.float32)
    o_ref[...] = (h * m_residual + r_ref[...].astype(jnp.float32)).astype(o_ref.dtype)


def attnproj_residual(attn, residual, w):
    T, H = attn.shape
    O = w.shape[1]
    TM = _row_tile(T)
    TN = _col_tile(O)
    itemsize = jnp.dtype(attn.dtype).itemsize
    blk = (TM * H + TM * TN + H * TN + TM * TN) * itemsize
    return pl.pallas_call(
        functools.partial(_attnproj_kernel, m_residual=M_RESIDUAL),
        out_shape=jax.ShapeDtypeStruct((T, O), attn.dtype),
        grid=(T // TM, O // TN),
        in_specs=[pl.BlockSpec((TM, H), lambda i, j: (i, 0)),
                  pl.BlockSpec((TM, TN), lambda i, j: (i, j)),
                  pl.BlockSpec((H, TN), lambda i, j: (0, j))],
        out_specs=pl.BlockSpec((TM, TN), lambda i, j: (i, j)),
        compiler_params=pltpu.CompilerParams(
            dimension_semantics=("parallel", "parallel"),
            vmem_limit_bytes=_vmem_limit(2 * blk)),
    )(attn, residual, w)


# --------------------------------- kernel 4 ---------------------------------- #

def _mlp_kernel(hs_ref, g_ref, wfc_ref, wproj_ref, o_ref, acc_ref, xn_ref,
                *, m_residual, eps):
    """out = (gelu(RMSNorm(hs)*g @ W_fc) @ W_proj) * m_res + hs, I-axis reduction."""
    j = pl.program_id(1)

    @pl.when(j == 0)
    def _():
        hs = hs_ref[...].astype(jnp.float32)
        var = jnp.mean(hs * hs, axis=-1, keepdims=True)
        xn = hs * lax.rsqrt(var + eps) * g_ref[...].astype(jnp.float32)
        xn_ref[...] = xn.astype(xn_ref.dtype)
        acc_ref[...] = jnp.zeros_like(acc_ref)

    # Partial MLP over one intermediate tile: acc += gelu(xn @ Wfc_j) @ Wproj_j
    h = jnp.dot(xn_ref[...], wfc_ref[...], preferred_element_type=jnp.float32)
    h = 0.5 * h * (1.0 + jnp.tanh(_GELU_C * (h + 0.044715 * h * h * h)))
    acc_ref[...] += jnp.dot(h.astype(wproj_ref.dtype), wproj_ref[...],
                            preferred_element_type=jnp.float32)

    @pl.when(j == pl.num_programs(1) - 1)
    def _():
        o_ref[...] = (acc_ref[...] * m_residual
                      + hs_ref[...].astype(jnp.float32)).astype(o_ref.dtype)


def mlp_residual(hs, g, w_fc, w_proj):
    T, H = hs.shape
    I = w_fc.shape[1]
    TM = _row_tile(T)
    TI = _inter_tile(I)
    itemsize = jnp.dtype(hs.dtype).itemsize
    blk = (TM * H + H + H * TI + TI * H + TM * H) * itemsize
    scratch = TM * H * 4 + TM * H * itemsize
    return pl.pallas_call(
        functools.partial(_mlp_kernel, m_residual=M_RESIDUAL, eps=EPS),
        out_shape=jax.ShapeDtypeStruct((T, H), hs.dtype),
        grid=(T // TM, I // TI),
        in_specs=[pl.BlockSpec((TM, H), lambda i, j: (i, 0)),     # hs (resident)
                  pl.BlockSpec((1, H), lambda i, j: (0, 0)),      # ln2 gain
                  pl.BlockSpec((H, TI), lambda i, j: (0, j)),     # W_fc tile
                  pl.BlockSpec((TI, H), lambda i, j: (j, 0))],    # W_proj tile
        out_specs=pl.BlockSpec((TM, H), lambda i, j: (i, 0)),
        scratch_shapes=[pltpu.VMEM((TM, H), jnp.float32),   # MLP accumulator
                        pltpu.VMEM((TM, H), hs.dtype)],     # normalized input cache
        compiler_params=pltpu.CompilerParams(
            dimension_semantics=("parallel", "arbitrary"),
            vmem_limit_bytes=_vmem_limit(2 * blk + scratch)),
    )(hs, g, w_fc, w_proj)


# ------------------------------- block forward ------------------------------- #

def desync_residual_block_forward(x, params, num_heads):
    B, S, H = x.shape
    D = H // num_heads
    T = B * S
    xf = x.reshape(T, H)

    # 1) fused RMSNorm + QKV projection (W_qkv N-tiled).
    qkv = rmsnorm_qkv(xf, params["ln1_g"], params["w_qkv"])          # (T, 3H)

    # 2) per-head (B*NH, S, D) layout for the flash kernel.
    # TODO(synk): fold this split/transpose into the flash kernel's q/k/v
    # BlockSpecs once head_dim is lane-aligned (128) to avoid the XLA relayout.
    qkv = qkv.reshape(B, S, 3, num_heads, D)
    q = qkv[:, :, 0].transpose(0, 2, 1, 3).reshape(B * num_heads, S, D)
    k = qkv[:, :, 1].transpose(0, 2, 1, 3).reshape(B * num_heads, S, D)
    v = qkv[:, :, 2].transpose(0, 2, 1, 3).reshape(B * num_heads, S, D)

    attn = flash_causal_attention(q, k, v)                           # (B*NH, S, D)
    attn = attn.reshape(B, num_heads, S, D).transpose(0, 2, 1, 3).reshape(T, H)

    # 3) attention output projection + scaled residual (W_attn_proj only
    #    resident here, not across the MLP I-reduction).
    hs = attnproj_residual(attn, xf, params["w_attn_proj"])          # (T, H)

    # 4) RMSNorm + MLP with intermediate-axis reduction + scaled residual.
    out = mlp_residual(hs, params["ln2_g"], params["w_fc"], params["w_proj"])
    return out.reshape(B, S, H)


# ----------------------------- pure-JAX reference ----------------------------- #

def reference_forward(x, params, num_heads):
    B, S, H = x.shape
    D = H // num_heads
    xf = x.reshape(-1, H).astype(jnp.float32)

    def rms(t, g):
        var = jnp.mean(t * t, axis=-1, keepdims=True)
        return t * lax.rsqrt(var + EPS) * g

    residual = xf
    qkv = rms(xf, params["ln1_g"]) @ params["w_qkv"]
    q, k, v = jnp.split(qkv, 3, axis=-1)
    q = q.reshape(B, S, num_heads, D).transpose(0, 2, 1, 3)
    k = k.reshape(B, S, num_heads, D).transpose(0, 2, 1, 3)
    v = v.reshape(B, S, num_heads, D).transpose(0, 2, 1, 3)
    s = jnp.einsum("bhqd,bhkd->bhqk", q, k) / (D ** 0.5)
    mask = jnp.tril(jnp.ones((S, S), dtype=bool))
    s = jnp.where(mask, s, -jnp.inf)
    p = jax.nn.softmax(s, axis=-1)
    a = jnp.einsum("bhqk,bhkd->bhqd", p, v).transpose(0, 2, 1, 3).reshape(-1, H)
    hs = (a @ params["w_attn_proj"]) * M_RESIDUAL + residual

    residual = hs
    h = rms(hs, params["ln2_g"]) @ params["w_fc"]
    h = 0.5 * h * (1.0 + jnp.tanh(_GELU_C * (h + 0.044715 * h ** 3)))
    out = (h @ params["w_proj"]) * M_RESIDUAL + residual
    return out.reshape(B, S, H)


# ------------------------------------ main ------------------------------------ #

if __name__ == "__main__":
    B, S, H = 2, 8, 32
    NUM_HEADS = 4
    INTERMEDIATE = 4 * H

    key = jax.random.PRNGKey(0)
    k_x, k_qkv, k_ap, k_fc, k_pr = jax.random.split(key, 5)

    x = jax.random.normal(k_x, (B, S, H), dtype=jnp.float32)

    params = {
        "ln1_g": jnp.ones((1, H), dtype=jnp.float32),
        "ln2_g": jnp.ones((1, H), dtype=jnp.float32),
        "w_qkv": 0.02 * jax.random.normal(k_qkv, (H, 3 * H), dtype=jnp.float32),
        "w_attn_proj": 0.02 * jax.random.normal(k_ap, (H, H), dtype=jnp.float32),
        "w_fc": 0.02 * jax.random.normal(k_fc, (H, INTERMEDIATE), dtype=jnp.float32),
        "w_proj": 0.02 * jax.random.normal(k_pr, (INTERMEDIATE, H), dtype=jnp.float32),
    }

    out = desync_residual_block_forward(x, params, NUM_HEADS)
    out = jax.block_until_ready(out)

    ref = reference_forward(x, params, NUM_HEADS)
    assert out.shape == (B, S, H)
    assert jnp.allclose(out, ref, atol=1e-2, rtol=1e-2), "mismatch vs reference"

    print("KERNEL_OK")
</pallas_src>

<mosaic_0001>
module attributes {stable_mosaic.version = 11 : i64} {
  func.func @_rmsnorm_qkv_kernel(%arg0: i32, %arg1: i32, %arg2: memref<16x32xf32, #tpu.memory_space<vmem>>, %arg3: memref<1x32xf32, #tpu.memory_space<vmem>>, %arg4: memref<32x96xf32, #tpu.memory_space<vmem>>, %arg5: memref<16x96xf32, #tpu.memory_space<vmem>>, %arg6: memref<16x32xf32, #tpu.memory_space<vmem>>) attributes {dimension_semantics = [#tpu.dimension_semantics<parallel>, #tpu.dimension_semantics<arbitrary>], iteration_bounds = array<i64: 1, 1>, scalar_prefetch = 0 : i64, scratch_operands = 1 : i64, tpu.core_type = #tpu.core_type<tc>, window_params = [{transform_indices = @transform_0, window_bounds = array<i64: 16, 32>}, {pipeline_mode = #tpu.pipeline_mode<synchronous>, transform_indices = @transform_1, window_bounds = array<i64: 1, 32>}, {transform_indices = @transform_2, window_bounds = array<i64: 32, 96>}, {transform_indices = @transform_3, window_bounds = array<i64: 16, 96>}]} {
    %c0_i32 = arith.constant 0 : i32
    %0 = arith.cmpi eq, %arg1, %c0_i32 : i32
    %1 = arith.extui %0 : i1 to i32
    %c0_i32_0 = arith.constant 0 : i32
    %2 = arith.cmpi ne, %1, %c0_i32_0 : i32
    scf.if %2 {
      %c0_6 = arith.constant 0 : index
      %c0_7 = arith.constant 0 : index
      %7 = vector.load %arg2[%c0_6, %c0_7] : memref<16x32xf32, #tpu.memory_space<vmem>>, vector<16x32xf32>
      %8 = arith.mulf %7, %7 : vector<16x32xf32>
      %cst_8 = arith.constant dense<0.000000e+00> : vector<16xf32>
      %9 = vector.multi_reduction <add>, %8, %cst_8 [1] : vector<16x32xf32> to vector<16xf32>
      %10 = vector.shape_cast %9 : vector<16xf32> to vector<16x1xf32>
      %cst_9 = arith.constant 3.200000e+01 : f32
      %11 = vector.broadcast %cst_9 : f32 to vector<16x1xf32>
      %12 = arith.divf %10, %11 : vector<16x1xf32>
      %cst_10 = arith.constant 9.99999974E-6 : f32
      %13 = vector.broadcast %cst_10 : f32 to vector<16x1xf32>
      %14 = arith.addf %12, %13 : vector<16x1xf32>
      %15 = math.rsqrt %14 : vector<16x1xf32>
      %16 = vector.broadcast %15 : vector<16x1xf32> to vector<16x32xf32>
      %17 = arith.mulf %7, %16 : vector<16x32xf32>
      %c0_11 = arith.constant 0 : index
      %c0_12 = arith.constant 0 : index
      %18 = vector.load %arg3[%c0_11, %c0_12] : memref<1x32xf32, #tpu.memory_space<vmem>>, vector<1x32xf32>
      %19 = vector.broadcast %18 : vector<1x32xf32> to vector<16x32xf32>
      %20 = arith.mulf %17, %19 : vector<16x32xf32>
      %c0_13 = arith.constant 0 : index
      %c0_14 = arith.constant 0 : index
      %21 = vector.load %arg6[%c0_13, %c0_14] : memref<16x32xf32, #tpu.memory_space<vmem>>, vector<16x32xf32>
      tpu.vector_store %arg6[%c0_13, %c0_14], %20 {strides = array<i32>} : memref<16x32xf32, #tpu.memory_space<vmem>>, vector<16x32xf32>,
    } else {
    }
    %c0 = arith.constant 0 : index
    %c0_1 = arith.constant 0 : index
    %3 = vector.load %arg6[%c0, %c0_1] : memref<16x32xf32, #tpu.memory_space<vmem>>, vector<16x32xf32>
    %c0_2 = arith.constant 0 : index
    %c0_3 = arith.constant 0 : index
    %4 = vector.load %arg4[%c0_2, %c0_3] : memref<32x96xf32, #tpu.memory_space<vmem>>, vector<32x96xf32>
    %cst = arith.constant dense<0.000000e+00> : vector<16x96xf32>
    %5 = tpu.matmul %3, %4, %cst {dimension_numbers = #tpu.dot_dimension_numbers<[1], [0], [0], [1], [0, 0, 1, 1], [], []>} : vector<16x32xf32>, vector<32x96xf32>, vector<16x96xf32> -> vector<16x96xf32>
    %c0_4 = arith.constant 0 : index
    %c0_5 = arith.constant 0 : index
    %6 = vector.load %arg5[%c0_4, %c0_5] : memref<16x96xf32, #tpu.memory_space<vmem>>, vector<16x96xf32>
    tpu.vector_store %arg5[%c0_4, %c0_5], %5 {strides = array<i32>} : memref<16x96xf32, #tpu.memory_space<vmem>>, vector<16x96xf32>,
    return
  }
  func.func @transform_0(%arg0: i32, %arg1: i32) -> (i32, i32) {
    %c0_i32 = arith.constant 0 : i32
    %c0_i32_0 = arith.constant 0 : i32
    return %arg0, %c0_i32 : i32, i32
  }
  func.func @transform_1(%arg0: i32, %arg1: i32) -> (i32, i32) {
    %c0_i32 = arith.constant 0 : i32
    %c0_i32_0 = arith.constant 0 : i32
    %c0_i32_1 = arith.constant 0 : i32
    return %c0_i32, %c0_i32_0 : i32, i32
  }
  func.func @transform_2(%arg0: i32, %arg1: i32) -> (i32, i32) {
    %c0_i32 = arith.constant 0 : i32
    %c0_i32_0 = arith.constant 0 : i32
    return %c0_i32, %arg1 : i32, i32
  }
  func.func @transform_3(%arg0: i32, %arg1: i32) -> (i32, i32) {
    %c0_i32 = arith.constant 0 : i32
    return %arg0, %arg1 : i32, i32
  }
}

</mosaic_0001>

<llo_original>
// kernel: tpu_custom_call.1
$region0: #{tpu_custom_call.1}
  #allocation0 [shape = 'u32[]', space=smem, size = 0x4, offset = 0x4, fixed_abs, tag = 'smem constant byte address 0x4 - core index']
  #allocation1 [shape = 'u32[144,128]{1,0:T(1,128)}', space=vmem, size = 0x12000, scoped, tag = 'internal scratch']
  #allocation2 [shape = 'f32[16,32]{1,0:T(8,128)}', space=vmem, size = 0x2000, scoped, tag = 'scratch operand']
  %s0 = inlined_call_operand.hbm [shape: f32[16,32], index: 0, kind: input, shape index: {}]
  %s1 = inlined_call_operand.vmem [shape: f32[1,32], index: 1, kind: input, shape index: {}]
  %s2 = inlined_call_operand.hbm [shape: f32[32,96], index: 2, kind: input, shape index: {}]
  %s3 = inlined_call_operand.hbm [shape: f32[16,96], index: 3, kind: output, shape index: {}]
  %s4 = sld [smem:[#allocation0]]
  $region34: #{tpu_custom_call.1} parent=0
    _
  %s6 = ssub.s32 1, %s4
  %s7 = scalar_select 0, %s6, %s4
  $region1: #{tpu_custom_call.1} parent=0
    #allocation3 [shape = 'u8[8192]{0}', space=vmem, size = 0x2000, scoped, tag = 'input window, operand 0, single buffered']
    #allocation4 [shape = 's32[1]{0}', space=sflag, size = 0x4, scoped, tag = 'scoped memory for tpu_custom_call.1']
    #allocation5 [shape = 's32[1]{0}', space=sflag, size = 0x4, scoped, tag = 'scoped memory for tpu_custom_call.1']
    #allocation6 [shape = 'u8[16384]{0}', space=vmem, size = 0x4000, scoped, tag = 'input window, operand 2, single buffered']
    #allocation7 [shape = 's32[1]{0}', space=sflag, size = 0x4, scoped, tag = 'scoped memory for tpu_custom_call.1']
    #allocation8 [shape = 'u8[8192]{0}', space=vmem, size = 0x2000, scoped, tag = 'output window, operand 0, single buffered']
    %8 = vsyncpa [#allocation4], 0
    %9 = vsyncpa [#allocation7], 0
    %10 = vsyncpa [#allocation5], 0
    // Predicated region
    $region2: #{tpu_custom_call.1} parent=1 // pred_check
      _
    $region3: #{tpu_custom_call.1} parent=1 // pred_check_branch
      %12 = sbr.rel (0) target = $region5
    $region4: #{tpu_custom_call.1} parent=1 // pred_region
      %s14 = ssub.s32 256, 256
      %15 = vsyncadd [#allocation4], %s14
      %s16 = sshll.u32 [#allocation3], 4
      %s17 = int_to_ptr.vmem [resolvable:$true] %s16
      %22 = dma.hbm_to_vmem [thread:$0]  %s0, 256, %s17, [#allocation4], 128, 128, 8
    $region5: #{tpu_custom_call.1} parent=1 // pred_fallthru
      _
    // Predicated region
    $region6: #{tpu_custom_call.1} parent=1 // pred_check
      _
    $region7: #{tpu_custom_call.1} parent=1 // pred_check_branch
      %24 = sbr.rel (0) target = $region9
    $region8: #{tpu_custom_call.1} parent=1 // pred_region
      _
    $region9: #{tpu_custom_call.1} parent=1 // pred_fallthru
      _
    // Predicated region
    $region10: #{tpu_custom_call.1} parent=1 // pred_check
      _
    $region11: #{tpu_custom_call.1} parent=1 // pred_check_branch
      %26 = sbr.rel (0) target = $region13
    $region12: #{tpu_custom_call.1} parent=1 // pred_region
      %s28 = ssub.s32 512, 512
      %29 = vsyncadd [#allocation7], %s28
      %s30 = sshll.u32 [#allocation6], 4
      %s31 = int_to_ptr.vmem [resolvable:$true] %s30
      %36 = dma.hbm_to_vmem [thread:$0]  %s2, 512, %s31, [#allocation7], 128, 128, 8
    $region13: #{tpu_custom_call.1} parent=1 // pred_fallthru
      _
    // Predicated region
    $region14: #{tpu_custom_call.1} parent=1 // pred_check
      _
    $region15: #{tpu_custom_call.1} parent=1 // pred_check_branch
      %38 = sbr.rel (0) target = $region17
    $region16: #{tpu_custom_call.1} parent=1 // pred_region
      %39 = dma.done [#allocation4], 256
    $region17: #{tpu_custom_call.1} parent=1 // pred_fallthru
      _
    // Predicated region
    $region18: #{tpu_custom_call.1} parent=1 // pred_check
      _
    $region19: #{tpu_custom_call.1} parent=1 // pred_check_branch
      %41 = sbr.rel (0) target = $region21
    $region20: #{tpu_custom_call.1} parent=1 // pred_region
      %42 = dma.done [#allocation7], 512
    $region21: #{tpu_custom_call.1} parent=1 // pred_fallthru
      _
    %p43 = scmp.eq.s32.totalorder 0, 0
    // Predicated region
    $region22: #{tpu_custom_call.1} parent=1 // pred_check
      %p44 = pneg %p43
    $region23: #{tpu_custom_call.1} parent=1 // pred_check_branch
      %46 = sbr.rel (%p44) target = $region25
    $region24: #{tpu_custom_call.1} parent=1 // pred_region
      %v47 = vld [vmem:[#allocation3] sm:$0xff]
      %v48 = vld [vmem:[#allocation3 + $0x8] sm:$0xff]
      %v49 = vmul.f32 %v47, %v47
      %v50 = vmul.f32 %v48, %v48
      %vm51 = vcmask 261120
      %v52 = vsel %vm51, %v49, 0.0
      %53 = vadd.xlane.f32.xlu0 %v52
      %v54 = vpop.xlane.xlu0 %53
      %v55 = vsel %vm51, %v50, 0.0
      %56 = vadd.xlane.f32.xlu0 %v55
      %v57 = vpop.xlane.xlu0 %56
      %v58 = vrcp.pop 32.0
      %v59 = vmul.f32 %v54, %v58
      %v60 = vmul.f32 %v57, %v58
      %v61 = vadd.f32 %v59, 1e-05
      %v62 = vadd.f32 %v60, 1e-05
      %v63 = vrsqrt.pop %v61
      %v64 = vrsqrt.pop %v62
      %v65 = vmul.f32 %v47, %v63
      %v66 = vmul.f32 %v48, %v64
      %v67 = vld [vmem:[%s1] sm:$0x1]
      %v69 = vlaneseq
      %v70 = vshrl.u32 %v69, 7
      %v71 = vsub.s32 0, %v70
      %v72 = vrot.slane %v67, %v71
      %v74 = vmul.f32 %v65, %v72
      %v75 = vmul.f32 %v66, %v72
      %76 = vst.msk [vmem:[#allocation2] sm:$0xff] %vm51, %v74
      %77 = vst.msk [vmem:[#allocation2 + $0x8] sm:$0xff] %vm51, %v75
    $region25: #{tpu_custom_call.1} parent=1 // pred_fallthru
      _
    %v78 = vld [vmem:[#allocation2] sm:$0xff]
    %v79 = vld [vmem:[#allocation2 + $0x8] sm:$0xff]
    %v80 = vld [vmem:[#allocation6] sm:$0xff]
    %v81 = vld [vmem:[#allocation6 + $0x8] sm:$0xff]
    %v82 = vld [vmem:[#allocation6 + $0x10] sm:$0xff]
    %v83 = vld [vmem:[#allocation6 + $0x18] sm:$0xff]
    %vm84 = vcmask 261120
    %v86 = vsel %vm84, %v78, 0
    %v89 = vsel %vm84, %v79, 0
    %91 = vmatprep.subr.mxu0 0.0
    %92 = vmatpush1.msra.mxu0 %v80
    %93 = vmatprep.subr.mxu0 0.0
    %94 = vmatpush1.msra.mxu0 %v81
    %95 = vmatprep.subr.mxu0 0.0
    %96 = vmatpush1.msra.mxu0 %v82
    %97 = vmatprep.subr.mxu0 0.0
    %98 = vmatpush1.msra.mxu0 %v83
    %99 = vmatprep.subr.mxu0 0.0
    %100 = vmatpush1.msra.mxu0 0.0
    %101 = vmatprep.subr.mxu0 0.0
    %102 = vmatpush1.msra.mxu0 0.0
    %103 = vmatprep.subr.mxu0 0.0
    %104 = vmatpush1.msra.mxu0 0.0
    %105 = vmatprep.subr.mxu0 0.0
    %106 = vmatpush1.msra.mxu0 0.0
    %107 = vmatprep.subr.mxu0 0.0
    %108 = vmatpush1.msra.mxu0 0.0
    %109 = vmatprep.subr.mxu0 0.0
    %110 = vmatpush1.msra.mxu0 0.0
    %111 = vmatprep.subr.mxu0 0.0
    %112 = vmatpush1.msra.mxu0 0.0
    %113 = vmatprep.subr.mxu0 0.0
    %114 = vmatpush1.msra.mxu0 0.0
    %115 = vmatprep.subr.mxu0 0.0
    %116 = vmatpush1.msra.mxu0 0.0
    %117 = vmatprep.subr.mxu0 0.0
    %118 = vmatpush1.msra.mxu0 0.0
    %119 = vmatprep.subr.mxu0 0.0
    %120 = vmatpush1.msra.mxu0 0.0
    %121 = vmatprep.subr.mxu0 0.0
    %122 = vmatpush1.msra.mxu0 0.0
    %123 = vmatprep.subr.mxu0 0.0
    %124 = vmatpush1.msra.mxu0 0.0
    %125 = vmatprep.subr.mxu0 0.0
    %126 = vmatpush1.msra.mxu0 0.0
    %127 = vmatprep.subr.mxu0 0.0
    %128 = vmatpush1.msra.mxu0 0.0
    %129 = vmatprep.subr.mxu0 0.0
    %130 = vmatpush1.msra.mxu0 0.0
    %131 = vmatprep.subr.mxu0 0.0
    %132 = vmatpush1.msra.mxu0 0.0
    %133 = vmatprep.subr.mxu0 0.0
    %134 = vmatpush1.msra.mxu0 0.0
    %135 = vmatprep.subr.mxu0 0.0
    %136 = vmatpush1.msra.mxu0 0.0
    %137 = vmatprep.subr.mxu0 0.0
    %138 = vmatpush1.msra.mxu0 0.0
    %139 = vmatprep.subr.mxu0 0.0
    %140 = vmatpush1.msra.mxu0 0.0
    %141 = vmatprep.subr.mxu0 0.0
    %142 = vmatpush1.msra.mxu0 0.0
    %143 = vmatprep.subr.mxu0 0.0
    %144 = vmatpush1.msra.mxu0 0.0
    %145 = vmatprep.subr.mxu0 0.0
    %146 = vmatpush1.msra.mxu0 0.0
    %147 = vmatprep.subr.mxu0 0.0
    %148 = vmatpush1.msra.mxu0 0.0
    %149 = vmatprep.subr.mxu0 0.0
    %150 = vmatpush1.msra.mxu0 0.0
    %151 = vmatprep.subr.mxu0 0.0
    %152 = vmatpush1.msra.mxu0 0.0
    %153 = vmatprep.subr.mxu0 0.0
    %154 = vmatpush1.msra.mxu0 0.0
    %155 = vmatprep.mubr.f32.mxu0 0.0
    %156 = vmatmul.mubr.f32.gmra.mrb[0].mxu0 %v86
    %v157 = vpop.f32.mrb[0].mxu0
    %v158 = vadd.f32 0.0, %v157
    %v159 = vpop.f32.mrb[0].mxu0
    %160 = vmatprep.mubr.f32.mxu0 0.0
    %161 = vmatmul.mubr.f32.gmra.mrb[0].mxu0 %v89
    %v162 = vpop.f32.mrb[0].mxu0
    %v163 = vadd.f32 0.0, %v162
    %v164 = vpop.f32.mrb[0].mxu0
    %165 = vdwg.mxu0
    %vm166 = vcmask 785408
    %167 = vst.msk [vmem:[#allocation8] sm:$0xff] %vm166, %v158
    %168 = vst.msk [vmem:[#allocation8 + $0x8] sm:$0xff] %vm166, %v163
    // Predicated region
    $region26: #{tpu_custom_call.1} parent=1 // pred_check
      _
    $region27: #{tpu_custom_call.1} parent=1 // pred_check_branch
      %170 = sbr.rel (0) target = $region29
    $region28: #{tpu_custom_call.1} parent=1 // pred_region
      %s172 = ssub.s32 256, 256
      %173 = vsyncadd [#allocation5], %s172
      %s174 = sshll.u32 [#allocation8], 4
      %s175 = int_to_ptr.vmem [resolvable:$true] %s174
      %180 = dma.vmem_to_hbm [thread:$0]  %s175, 256, %s3, [#allocation5], 128, 128, 8
    $region29: #{tpu_custom_call.1} parent=1 // pred_fallthru
      _
    // Predicated region
    $region30: #{tpu_custom_call.1} parent=1 // pred_check
      _
    $region31: #{tpu_custom_call.1} parent=1 // pred_check_branch
      %182 = sbr.rel (0) target = $region33
    $region32: #{tpu_custom_call.1} parent=1 // pred_region
      %183 = dma.done [#allocation5], 256
    $region33: #{tpu_custom_call.1} parent=1 // pred_fallthru
      _
    %184 = vsyncpa [#allocation4], 1
    %185 = vsyncpa [#allocation7], 1
    %186 = vsyncpa [#allocation5], 1

</llo_original>
